<compile_context>
chip_gen: v6e
topology: v6e:2x2x1
jax: 0.10.0
libtpu: 0.0.40
codegen_flags: <defaults>
</compile_context>

<pallas_src>
import functools
import math

import jax
import jax.numpy as jnp
from jax import lax
from jax.experimental import pallas as pl
from jax.experimental.pallas import tpu as pltpu


_TILE_BUDGET_BYTES = 6 * 1024 * 1024    # per buffered tile (4 tiles live => ~24 MiB)
_VMEM_LIMIT_BYTES = 48 * 1024 * 1024    # explicit: > v5e default scoped, < v7x physical
_MIN_GRID_STEPS = 4                     # keep pipelining + both v7x cores busy


def _rup(x, m):
    return ((x + m - 1) // m) * m


def _row_align(itemsize):
    # rows per packed sublane tile: f32 -> 8, bf16 -> 16, int8/fp8 -> 32
    return {4: 8, 2: 16, 1: 32}.get(int(itemsize), 8)


# ----------------------------------------------------------------------------------
# Kernel A: normalize over the LAST axis.  One (tr, D) tile per grid step.
# ----------------------------------------------------------------------------------
def _rownorm_kernel(x_ref, g_ref, o_ref, *, inv_d, eps):
    x = x_ref[...].astype(jnp.float32)                      # (tr, D)
    mean = jnp.sum(x, axis=-1, keepdims=True) * inv_d
    d = x - mean
    var = jnp.sum(d * d, axis=-1, keepdims=True) * inv_d    # unbiased=False, two-pass
    y = d * lax.rsqrt(var + eps) * g_ref[...].astype(jnp.float32)
    o_ref[...] = y.astype(o_ref.dtype)


def _rownorm(x2, g, *, eps):
    """x2: (R, D) rows normalized over the last axis; g: (D,)."""
    R, D = x2.shape
    dtype = x2.dtype
    itemsize = jnp.dtype(dtype).itemsize
    ra = _row_align(itemsize)

    tr_budget = max(ra, (_TILE_BUDGET_BYTES // max(D * itemsize, 1)) // ra * ra)
    tr_steps = _rup(-(-R // _MIN_GRID_STEPS), ra)           # aim for >= ~4 grid steps
    tr = max(ra, min(tr_budget, tr_steps, _rup(R, ra)))
    grid = (pl.cdiv(R, tr),)                                # remainder rows masked by Mosaic

    g2 = g.reshape(1, D).astype(dtype)

    kern = functools.partial(_rownorm_kernel, inv_d=1.0 / D, eps=eps)
    return pl.pallas_call(
        kern,
        out_shape=jax.ShapeDtypeStruct((R, D), dtype),
        grid_spec=pltpu.PrefetchScalarGridSpec(
            num_scalar_prefetch=0,
            grid=grid,
            in_specs=[pl.BlockSpec((tr, D), lambda i: (i, 0)),      # D == full dim (any size)
                      pl.BlockSpec((1, D), lambda i: (0, 0))],      # gamma: one row, reused
            out_specs=pl.BlockSpec((tr, D), lambda i: (i, 0))),
        compiler_params=pltpu.CompilerParams(
            dimension_semantics=("parallel",),
            vmem_limit_bytes=_VMEM_LIMIT_BYTES),
    )(x2, g2)


# ----------------------------------------------------------------------------------
# Kernel B: normalize over the SUBLANE axis of a (pre, C, post) view (dim != -1),
# avoiding any out-of-kernel transpose.  One (1, C, tq) tile per grid step.
# ----------------------------------------------------------------------------------
def _colnorm_kernel(x_ref, g_ref, o_ref, *, inv_c, eps):
    x = x_ref[...].astype(jnp.float32)                      # (1, C, tq)
    mean = jnp.sum(x, axis=-2, keepdims=True) * inv_c       # (1, 1, tq)
    d = x - mean
    var = jnp.sum(d * d, axis=-2, keepdims=True) * inv_c
    y = d * lax.rsqrt(var + eps) * g_ref[...].astype(jnp.float32)   # g: (1, C, 1)
    o_ref[...] = y.astype(o_ref.dtype)


def _colnorm(x3, g, *, eps):
    """x3: (pre, C, post) normalized over axis -2; g: (C,)."""
    P, C, Q = x3.shape
    dtype = x3.dtype
    itemsize = jnp.dtype(dtype).itemsize

    if Q <= 128:
        tq = Q                                               # full-dim block: any size legal
    else:
        tq_budget = max(128, (_TILE_BUDGET_BYTES // max(C * itemsize, 1)) // 128 * 128)
        min_q_steps = max(1, -(-_MIN_GRID_STEPS // P))
        tq_steps = _rup(-(-Q // min_q_steps), 128)
        tq = max(128, min(tq_budget, tq_steps, _rup(Q, 128)))
    grid = (P, pl.cdiv(Q, tq))                               # remainder lanes masked by Mosaic

    g3 = g.reshape(1, C, 1).astype(dtype)

    kern = functools.partial(_colnorm_kernel, inv_c=1.0 / C, eps=eps)
    return pl.pallas_call(
        kern,
        out_shape=jax.ShapeDtypeStruct((P, C, Q), dtype),
        grid_spec=pltpu.PrefetchScalarGridSpec(
            num_scalar_prefetch=0,
            grid=grid,
            in_specs=[pl.BlockSpec((1, C, tq), lambda p, q: (p, 0, q)),
                      pl.BlockSpec((1, C, 1), lambda p, q: (0, 0, 0))],   # gamma column
            out_specs=pl.BlockSpec((1, C, tq), lambda p, q: (p, 0, q))),
        compiler_params=pltpu.CompilerParams(
            dimension_semantics=("parallel", "parallel"),
            vmem_limit_bytes=_VMEM_LIMIT_BYTES),
    )(x3, g3)


# ----------------------------------------------------------------------------------
# Module-equivalent wrapper: LayerNorm(feats, dim).forward(x)
# ----------------------------------------------------------------------------------
def layer_norm(x, g, dim=-1):
    """Pallas equivalent of the reference LayerNorm.forward.

    g may carry trailing singleton dims (feats, 1, ..., 1) exactly as the module
    stores them for dim < -1; normalization is over `dim` only.
    """
    eps = 1e-5 if x.dtype == jnp.float32 else 1e-3
    g1 = g.reshape(-1)                                       # (feats,)
    ax = dim % x.ndim
    shp = x.shape

    if ax == x.ndim - 1:
        R = int(math.prod(shp[:-1]))
        y = _rownorm(x.reshape(R, shp[-1]), g1, eps=eps)
    else:
        P = int(math.prod(shp[:ax]))
        C = shp[ax]
        Q = int(math.prod(shp[ax + 1:]))
        y = _colnorm(x.reshape(P, C, Q), g1, eps=eps)        # no transpose, reshape is free
    return y.reshape(shp)


# ----------------------------------------------------------------------------------
if __name__ == "__main__":
    key = jax.random.PRNGKey(0)
    k1, k2, k3, k4 = jax.random.split(key, 4)

    # Case 1: token LayerNorm over the last dim (dim=-1), small hidden size (32).
    B, N, D = 2, 8, 32
    x = jax.random.normal(k1, (B, N, D), jnp.float32)
    g = 1.0 + 0.1 * jax.random.normal(k2, (D,), jnp.float32)

    out = jax.block_until_ready(jax.jit(layer_norm)(x, g))
    mean = jnp.mean(x, axis=-1, keepdims=True)
    var = jnp.mean((x - mean) ** 2, axis=-1, keepdims=True)
    ref = (x - mean) * lax.rsqrt(var + 1e-5) * g
    assert out.shape == x.shape
    assert bool(jnp.all(jnp.isfinite(out)))
    assert float(jnp.max(jnp.abs(out - ref))) < 1e-4

    # Case 2: channel LayerNorm over dim=-3 (NCHW) with a (C, 1, 1) gamma;
    # exercises the transpose-free sublane-reduction path.
    C, H, W = 4, 16, 16
    x2 = jax.random.normal(k3, (B, C, H, W), jnp.float32)
    g2 = 1.0 + 0.05 * jax.random.normal(k4, (C, 1, 1), jnp.float32)

    out2 = jax.block_until_ready(jax.jit(lambda a, b: layer_norm(a, b, dim=-3))(x2, g2))
    mean2 = jnp.mean(x2, axis=-3, keepdims=True)
    var2 = jnp.mean((x2 - mean2) ** 2, axis=-3, keepdims=True)
    ref2 = (x2 - mean2) * lax.rsqrt(var2 + 1e-5) * g2
    assert out2.shape == x2.shape
    assert bool(jnp.all(jnp.isfinite(out2)))
    assert float(jnp.max(jnp.abs(out2 - ref2))) < 1e-4

    print("KERNEL_OK")
</pallas_src>

<mosaic_0001>
module attributes {stable_mosaic.version = 11 : i64} {
  func.func @_rownorm_kernel(%arg0: i32, %arg1: memref<8x32xf32, #tpu.memory_space<vmem>>, %arg2: memref<1x32xf32, #tpu.memory_space<vmem>>, %arg3: memref<8x32xf32, #tpu.memory_space<vmem>>) attributes {dimension_semantics = [#tpu.dimension_semantics<parallel>], iteration_bounds = array<i64: 2>, scalar_prefetch = 0 : i64, scratch_operands = 0 : i64, tpu.core_type = #tpu.core_type<tc>, window_params = [{transform_indices = @transform_0, window_bounds = array<i64: 8, 32>}, {pipeline_mode = #tpu.pipeline_mode<synchronous>, transform_indices = @transform_1, window_bounds = array<i64: 1, 32>}, {transform_indices = @transform_2, window_bounds = array<i64: 8, 32>}]} {
    %c0 = arith.constant 0 : index
    %c0_0 = arith.constant 0 : index
    %0 = vector.load %arg1[%c0, %c0_0] : memref<8x32xf32, #tpu.memory_space<vmem>>, vector<8x32xf32>
    %cst = arith.constant dense<0.000000e+00> : vector<8xf32>
    %1 = vector.multi_reduction <add>, %0, %cst [1] : vector<8x32xf32> to vector<8xf32>
    %2 = vector.shape_cast %1 : vector<8xf32> to vector<8x1xf32>
    %cst_1 = arith.constant 3.125000e-02 : f32
    %3 = vector.broadcast %cst_1 : f32 to vector<8x1xf32>
    %4 = arith.mulf %2, %3 : vector<8x1xf32>
    %5 = vector.broadcast %4 : vector<8x1xf32> to vector<8x32xf32>
    %6 = arith.subf %0, %5 : vector<8x32xf32>
    %7 = arith.mulf %6, %6 : vector<8x32xf32>
    %cst_2 = arith.constant dense<0.000000e+00> : vector<8xf32>
    %8 = vector.multi_reduction <add>, %7, %cst_2 [1] : vector<8x32xf32> to vector<8xf32>
    %9 = vector.shape_cast %8 : vector<8xf32> to vector<8x1xf32>
    %cst_3 = arith.constant 3.125000e-02 : f32
    %10 = vector.broadcast %cst_3 : f32 to vector<8x1xf32>
    %11 = arith.mulf %9, %10 : vector<8x1xf32>
    %cst_4 = arith.constant 9.99999974E-6 : f32
    %12 = vector.broadcast %cst_4 : f32 to vector<8x1xf32>
    %13 = arith.addf %11, %12 : vector<8x1xf32>
    %14 = math.rsqrt %13 : vector<8x1xf32>
    %15 = vector.broadcast %14 : vector<8x1xf32> to vector<8x32xf32>
    %16 = arith.mulf %6, %15 : vector<8x32xf32>
    %c0_5 = arith.constant 0 : index
    %c0_6 = arith.constant 0 : index
    %17 = vector.load %arg2[%c0_5, %c0_6] : memref<1x32xf32, #tpu.memory_space<vmem>>, vector<1x32xf32>
    %18 = vector.broadcast %17 : vector<1x32xf32> to vector<8x32xf32>
    %19 = arith.mulf %16, %18 : vector<8x32xf32>
    %c0_7 = arith.constant 0 : index
    %c0_8 = arith.constant 0 : index
    %20 = vector.load %arg3[%c0_7, %c0_8] : memref<8x32xf32, #tpu.memory_space<vmem>>, vector<8x32xf32>
    tpu.vector_store %arg3[%c0_7, %c0_8], %19 {strides = array<i32>} : memref<8x32xf32, #tpu.memory_space<vmem>>, vector<8x32xf32>,
    return
  }
  func.func @transform_0(%arg0: i32) -> (i32, i32) {
    %c0_i32 = arith.constant 0 : i32
    %c0_i32_0 = arith.constant 0 : i32
    return %arg0, %c0_i32 : i32, i32
  }
  func.func @transform_1(%arg0: i32) -> (i32, i32) {
    %c0_i32 = arith.constant 0 : i32
    %c0_i32_0 = arith.constant 0 : i32
    %c0_i32_1 = arith.constant 0 : i32
    return %c0_i32, %c0_i32_0 : i32, i32
  }
  func.func @transform_2(%arg0: i32) -> (i32, i32) {
    %c0_i32 = arith.constant 0 : i32
    %c0_i32_0 = arith.constant 0 : i32
    return %arg0, %c0_i32 : i32, i32
  }
}

</mosaic_0001>

<llo_original>
// kernel: layer_norm.1
$region0: #{layer_norm.1}
  #allocation0 [shape = 'u32[]', space=smem, size = 0x4, offset = 0x4, fixed_abs, tag = 'smem constant byte address 0x4 - core index']
  #allocation1 [shape = 'u32[144,128]{1,0:T(1,128)}', space=vmem, size = 0x12000, scoped, tag = 'internal scratch']
  %s0 = inlined_call_operand.hbm [shape: f32[16,32], index: 0, kind: input, shape index: {}]
  %s1 = inlined_call_operand.vmem [shape: f32[1,32], index: 1, kind: input, shape index: {}]
  %s2 = inlined_call_operand.hbm [shape: f32[16,32], index: 2, kind: output, shape index: {}]
  %s3 = sld [smem:[#allocation0]]
  $region45: #{layer_norm.1} parent=0
    _
  %s5 = ssub.s32 1, %s3
  %s6 = scalar_select 0, %s5, %s3
  $region1: #{layer_norm.1} parent=0
    #allocation2 [shape = 'u8[8192]{0}', space=vmem, size = 0x2000, scoped, tag = 'input window, operand 0']
    #allocation3 [shape = 's32[2]{0}', space=sflag, size = 0x8, scoped, tag = 'scoped memory for layer_norm.1']
    #allocation4 [shape = 's32[2]{0}', space=sflag, size = 0x8, scoped, tag = 'scoped memory for layer_norm.1']
    #allocation5 [shape = 'u8[8192]{0}', space=vmem, size = 0x2000, scoped, tag = 'output window, operand 0']
    %7 = vsyncpa [#allocation3], 0
    %s8 = scalar_lea.sflag [#allocation3], 1
    %9 = vsyncpa %s8, 0
    %10 = vsyncpa [#allocation4], 0
    %s11 = scalar_lea.sflag [#allocation4], 1
    %12 = vsyncpa %s11, 0
    loop: start=0, step=1, limit=4
    $region2: #{layer_norm.1} parent=1 // loop_pre_header
      _
    $region3: #{layer_norm.1} parent=1 // loop_header
      %s14 = sphi 0, %s18
      %p15 = scmp.ge.s32.totalorder %s14, 4
      %s24 = sphi 0, %s26
      %s27 = sphi 0, %s24
      %s28 = sphi 0, %s27
      %s44 = sphi 0, %s28
      %s48 = sphi 0, %s48
      %s50 = sphi 0, %s48
      %s51 = sphi 0, %s50
      %s65 = sphi 0, %s51
      %s71 = sphi 0, %s73
      %s74 = sphi 0, %s71
      %s75 = sphi 0, %s74
      %s91 = sphi 0, %s75
    $region4: #{layer_norm.1} parent=1 // loop_header_branch
      %17 = sbr.rel (%p15) target = $region8
    $region5: #{layer_norm.1} parent=1 // loop_body
      %s19 = ssub.s32 %s14, 1
      %s20 = ssub.s32 %s14, 2
      %s21 = sadd.s32 %s14, 1
      %s22 = ssub.s32 %s14, %s21
      %p23 = scmp.eq.s32.totalorder %s22, 0
      %s25 = sadd.s32 %s24, 1
      %s26 = scalar_select %p23, %s24, %s25
      %p29 = pneg %p23
      %p30 = scmp.eq.s32.totalorder %s14, 1
      %p31 = por %p29, %p30
      %p32 = scmp.ne.s32.totalorder %s24, %s27
      %p33 = scmp.eq.s32.totalorder %s14, 0
      %p34 = por %p32, %p33
      %p35 = scmp.ne.s32.totalorder %s24, %s27
      %p36 = scmp.eq.s32.totalorder %s19, 1
      %p37 = por %p35, %p36
      %p38 = scmp.ne.s32.totalorder %s27, %s28
      %p39 = scmp.eq.s32.totalorder %s19, 0
      %p40 = por %p38, %p39
      %p41 = scmp.ne.s32.totalorder %s27, %s28
      %p42 = scmp.eq.s32.totalorder %s20, 1
      %p43 = por %p41, %p42
      %p45 = scmp.ne.s32.totalorder %s28, %s44
      %p46 = scmp.eq.s32.totalorder %s20, 0
      %p47 = por %p45, %p46
      %s49 = sadd.s32 %s48, 1
      %p52 = scmp.eq.s32.totalorder %s14, 1
      %p53 = scmp.ne.s32.totalorder %s48, %s50
      %p54 = scmp.eq.s32.totalorder %s14, 0
      %p55 = por %p53, %p54
      %p56 = scmp.ne.s32.totalorder %s48, %s50
      %p57 = scmp.eq.s32.totalorder %s19, 1
      %p58 = por %p56, %p57
      %p59 = scmp.ne.s32.totalorder %s50, %s51
      %p60 = scmp.eq.s32.totalorder %s19, 0
      %p61 = por %p59, %p60
      %p62 = scmp.ne.s32.totalorder %s50, %s51
      %p63 = scmp.eq.s32.totalorder %s20, 1
      %p64 = por %p62, %p63
      %p66 = scmp.ne.s32.totalorder %s51, %s65
      %p67 = scmp.eq.s32.totalorder %s20, 0
      %p68 = por %p66, %p67
      %s69 = ssub.s32 %s14, %s21
      %p70 = scmp.eq.s32.totalorder %s69, 0
      %s72 = sadd.s32 %s71, 1
      %s73 = scalar_select %p70, %s71, %s72
      %p76 = pneg %p70
      %p77 = scmp.eq.s32.totalorder %s14, 1
      %p78 = por %p76, %p77
      %p79 = scmp.ne.s32.totalorder %s71, %s74
      %p80 = scmp.eq.s32.totalorder %s14, 0
      %p81 = por %p79, %p80
      %p82 = scmp.ne.s32.totalorder %s71, %s74
      %p83 = scmp.eq.s32.totalorder %s19, 1
      %p84 = por %p82, %p83
      %p85 = scmp.ne.s32.totalorder %s74, %s75
      %p86 = scmp.eq.s32.totalorder %s19, 0
      %p87 = por %p85, %p86
      %p88 = scmp.ne.s32.totalorder %s74, %s75
      %p89 = scmp.eq.s32.totalorder %s20, 1
      %p90 = por %p88, %p89
      %p92 = scmp.ne.s32.totalorder %s75, %s91
      %p93 = scmp.eq.s32.totalorder %s20, 0
      %p94 = por %p92, %p93
      %p95 = scmp.le.s32.totalorder 1, %s14
      %p96 = scmp.lt.s32.totalorder %s14, 3
      %p97 = pnand %p95, %p96
      %p98 = pneg %p97
      // Predicated region
      $region9: #{layer_norm.1} parent=5 // pred_check
        _
      $region10: #{layer_norm.1} parent=5 // pred_check_branch
        %100 = sbr.rel (%p97) target = $region12
      $region11: #{layer_norm.1} parent=5 // pred_region
        %s101 = ssub.s32 %s14, 1
        // Predicated region
        $region13: #{layer_norm.1} parent=11 // pred_check
          %p102 = pneg %p61
        $region14: #{layer_norm.1} parent=11 // pred_check_branch
          %104 = sbr.rel (%p102) target = $region16
        $region15: #{layer_norm.1} parent=11 // pred_region
          _
        $region16: #{layer_norm.1} parent=11 // pred_fallthru
          _
      $region12: #{layer_norm.1} parent=5 // pred_fallthru
        _
      %p105 = scmp.lt.s32.totalorder %s14, 2
      // Predicated region
      $region17: #{layer_norm.1} parent=5 // pred_check
        %p106 = pneg %p105
      $region18: #{layer_norm.1} parent=5 // pred_check_branch
        %108 = sbr.rel (%p106) target = $region20
      $region19: #{layer_norm.1} parent=5 // pred_region
        // Predicated region
        $region21: #{layer_norm.1} parent=19 // pred_check
          %p109 = pneg %p34
        $region22: #{layer_norm.1} parent=19 // pred_check_branch
          %111 = sbr.rel (%p109) target = $region24
        $region23: #{layer_norm.1} parent=19 // pred_region
          %s112 = sand.u32 %s24, 1
          %s113 = scalar_lea.sflag [#allocation3], %s112
          %s114 = sand.u32 %s24, 1
          %s115 = smul.addr %s114, 8
          %s116 = scalar_lea.vmem [#allocation2], %s115
          %s118 = ssub.s32 128, 128
          %119 = vsyncadd %s113, %s118
          %s120 = smul.addr %s14, 128
          %s121 = scalar_lea.hbm %s0, %s120
          %s123 = sshll.u32 %s116, 4
          %s124 = int_to_ptr.vmem [resolvable:$true] %s123
          %126 = dma.hbm_to_vmem [thread:$0]  %s121, 128, %s124, %s113
        $region24: #{layer_norm.1} parent=19 // pred_fallthru
          _
      $region20: #{layer_norm.1} parent=5 // pred_fallthru
        _
      %p127 = scmp.le.s32.totalorder 1, %s14
      %p128 = scmp.lt.s32.totalorder %s14, 3
      %p129 = pnand %p127, %p128
      %p130 = pneg %p129
      // Predicated region
      $region25: #{layer_norm.1} parent=5 // pred_check
        _
      $region26: #{layer_norm.1} parent=5 // pred_check_branch
        %132 = sbr.rel (%p129) target = $region28
      $region27: #{layer_norm.1} parent=5 // pred_region
        %s133 = ssub.s32 %s14, 1
        %s134 = sand.u32 %s27, 1
        %s135 = scalar_lea.sflag [#allocation3], %s134
        %s136 = sand.u32 %s27, 1
        %s137 = smul.addr %s136, 8
        %s138 = scalar_lea.vmem [#allocation2], %s137
        // Predicated region
        $region29: #{layer_norm.1} parent=27 // pred_check
          %p139 = pneg %p40
        $region30: #{layer_norm.1} parent=27 // pred_check_branch
          %141 = sbr.rel (%p139) target = $region32
        $region31: #{layer_norm.1} parent=27 // pred_region
          %142 = dma.done %s135, 128
        $region32: #{layer_norm.1} parent=27 // pred_fallthru
          _
        %s143 = sand.u32 %s27, 1
        %s144 = scalar_lea.sflag [#allocation3], %s143
        %s145 = sand.u32 %s27, 1
        %s146 = smul.addr %s145, 8
        %s147 = scalar_lea.vmem [#allocation2], %s146
        %p148 = pneg %p40
        %p149 = pneg %p37
        %p150 = pneg %p61
        %p151 = pneg %p58
        %p152 = pneg %p87
        %p153 = pneg %p84
        %s154 = sand.u32 %s74, 1
        %s155 = scalar_lea.sflag [#allocation4], %s154
        %s156 = sand.u32 %s74, 1
        %s157 = smul.addr %s156, 8
        %s158 = scalar_lea.vmem [#allocation5], %s157
        %v159 = vld [vmem:[%s138] sm:$0xff]
        %vm160 = vcmask 261120
        %v161 = vsel %vm160, %v159, 0.0
        %162 = vadd.xlane.f32.xlu0 %v161
        %v163 = vpop.xlane.xlu0 %162
        %v164 = vmul.f32 %v163, 0.03125
        %v165 = vsub.f32 %v159, %v164
        %v166 = vmul.f32 %v165, %v165
        %v167 = vsel %vm160, %v166, 0.0
        %168 = vadd.xlane.f32.xlu0 %v167
        %v169 = vpop.xlane.xlu0 %168
        %v170 = vmul.f32 %v169, 0.03125
        %v171 = vadd.f32 %v170, 1e-05
        %v172 = vrsqrt.pop %v171
        %v173 = vmul.f32 %v165, %v172
        %v174 = vld [vmem:[%s1] sm:$0x1]
        %v176 = vlaneseq
        %v177 = vshrl.u32 %v176, 7
        %v178 = vsub.s32 0, %v177
        %v179 = vrot.slane %v174, %v178
        %v181 = vmul.f32 %v173, %v179
        %182 = vst.msk [vmem:[%s158] sm:$0xff] %vm160, %v181
        %s183 = sand.u32 %s74, 1
        %s184 = scalar_lea.sflag [#allocation4], %s183
        %s185 = sand.u32 %s74, 1
        %s186 = smul.addr %s185, 8
        %s187 = scalar_lea.vmem [#allocation5], %s186
        // Predicated region
        $region33: #{layer_norm.1} parent=27 // pred_check
          %p188 = pneg %p84
        $region34: #{layer_norm.1} parent=27 // pred_check_branch
          %190 = sbr.rel (%p188) target = $region36
        $region35: #{layer_norm.1} parent=27 // pred_region
          %s192 = ssub.s32 128, 128
          %193 = vsyncadd %s184, %s192
          %s194 = smul.addr %s19, 128
          %s195 = scalar_lea.hbm %s2, %s194
          %s197 = sshll.u32 %s187, 4
          %s198 = int_to_ptr.vmem [resolvable:$true] %s197
          %200 = dma.vmem_to_hbm [thread:$0]  %s198, 128, %s195, %s184
        $region36: #{layer_norm.1} parent=27 // pred_fallthru
          _
      $region28: #{layer_norm.1} parent=5 // pred_fallthru
        _
      %p201 = scmp.le.s32.totalorder 2, %s14
      // Predicated region
      $region37: #{layer_norm.1} parent=5 // pred_check
        %p202 = pneg %p201
      $region38: #{layer_norm.1} parent=5 // pred_check_branch
        %204 = sbr.rel (%p202) target = $region40
      $region39: #{layer_norm.1} parent=5 // pred_region
        %s205 = ssub.s32 %s14, 2
        // Predicated region
        $region41: #{layer_norm.1} parent=39 // pred_check
          %p206 = pneg %p90
        $region42: #{layer_norm.1} parent=39 // pred_check_branch
          %208 = sbr.rel (%p206) target = $region44
        $region43: #{layer_norm.1} parent=39 // pred_region
          %s209 = sand.u32 %s75, 1
          %s210 = scalar_lea.sflag [#allocation4], %s209
          %s211 = sand.u32 %s75, 1
          %s212 = smul.addr %s211, 8
          %s213 = scalar_lea.vmem [#allocation5], %s212
          %214 = dma.done %s210, 128
        $region44: #{layer_norm.1} parent=39 // pred_fallthru
          _
      $region40: #{layer_norm.1} parent=5 // pred_fallthru
        _
    $region6: #{layer_norm.1} parent=1 // loop_footer
      %s18 = sadd.s32 1, %s14
    $region7: #{layer_norm.1} parent=1 // loop_footer_branch
      %13 = sbr.rel target = $region3
    $region8: #{layer_norm.1} parent=1 // loop_exit
      _
    %215 = vsyncpa [#allocation3], 1
    %s216 = scalar_lea.sflag [#allocation3], 1
    %217 = vsyncpa %s216, 1
    %218 = vsyncpa [#allocation4], 1
    %s219 = scalar_lea.sflag [#allocation4], 1
    %220 = vsyncpa %s219, 1

</llo_original>
